<compile_context>
chip_gen: v7x
topology: tpu7x:2x2x1
jax: 0.10.0
libtpu: 0.0.40
codegen_flags: <defaults>
</compile_context>

<pallas_src>
import jax
import jax.numpy as jnp
from jax.experimental import pallas as pl
from jax.experimental.pallas import tpu as pltpu


def se_kernel(x_ref, w_ref, o_ref):
    # x_ref : (1, C, HW)   one image, channels on sublanes, spatial on lanes
    # w_ref : (C + 1, 2R + 1) packed [w1^T | w2 | b2 ; b1]
    # o_ref : (1, C, HW)
    C = x_ref.shape[1]
    R = (w_ref.shape[1] - 1) // 2

    x = x_ref[0].astype(jnp.float32)                    # (C, HW)
    wp = w_ref[...].astype(jnp.float32)                 # (C+1, 2R+1), loaded once

    w1t = wp[:C, 0:R]                                   # (C, R)  fc1 weight (transposed)
    w2 = wp[:C, R:2 * R]                                # (C, R)  fc2 weight
    b2 = wp[:C, 2 * R:2 * R + 1]                        # (C, 1)  fc2 bias
    b1 = wp[C:C + 1, 0:R]                               # (1, R)  fc1 bias

    # Global average pool over the spatial (lane) axis.
    pooled = jnp.mean(x, axis=-1, keepdims=True)        # (C, 1)

    # fc1 (1x1 conv C->R): VPU multiply + sublane sum (no MXU), then Swish.
    s1 = jnp.sum(w1t * pooled, axis=0, keepdims=True) + b1   # (1, R)
    s1 = s1 * jax.nn.sigmoid(s1)

    # fc2 (1x1 conv R->C): VPU multiply + lane sum, then Sigmoid gate.
    s2 = jnp.sum(w2 * s1, axis=1, keepdims=True) + b2        # (C, 1)
    gate = jax.nn.sigmoid(s2)                                 # (C, 1)

    # Scale the input (lane-dense store, last dim = HW = multiple of 128).
    o_ref[0] = (x * gate).astype(o_ref.dtype)


def squeeze_excitation_pallas(x_nchw, wpack):
    """x_nchw: (N, C, H, W); wpack: packed SE params (C+1, 2R+1)."""
    N, C, H, W = x_nchw.shape
    HW = H * W                                           # 256 here -> lane-dense
    R = (wpack.shape[1] - 1) // 2
    x2 = x_nchw.reshape(N, C, HW)                        # contiguous view, no transpose

    out = pl.pallas_call(
        se_kernel,
        out_shape=jax.ShapeDtypeStruct((N, C, HW), x_nchw.dtype),
        grid=(N,),
        in_specs=[
            pl.BlockSpec((1, C, HW), lambda n: (n, 0, 0)),
            pl.BlockSpec((C + 1, 2 * R + 1), lambda n: (0, 0)),   # resident weights
        ],
        out_specs=pl.BlockSpec((1, C, HW), lambda n: (n, 0, 0)),
        compiler_params=pltpu.CompilerParams(
            dimension_semantics=("parallel",)),          # v7x: split batch across 2 TCs
    )(x2, wpack)
    return out.reshape(N, C, H, W)


def pack_se_params(w1, b1, w2, b2):
    """Pack Conv2d(C->R) and Conv2d(R->C) 1x1 weights/biases into one slab.

    w1: (R, C), b1: (R,), w2: (C, R), b2: (C,)  ->  (C+1, 2R+1)
    """
    R, C = w1.shape
    wpack = jnp.zeros((C + 1, 2 * R + 1), jnp.float32)
    wpack = wpack.at[:C, 0:R].set(w1.T)
    wpack = wpack.at[:C, R:2 * R].set(w2)
    wpack = wpack.at[:C, 2 * R:2 * R + 1].set(b2.reshape(C, 1))
    wpack = wpack.at[C:C + 1, 0:R].set(b1.reshape(1, R))
    return wpack


def ref_se(x_nchw, w1, b1, w2, b2):
    """Pure-JAX reference matching PyTorch SqueezeExcitation.forward."""
    x = x_nchw.astype(jnp.float32)
    pooled = jnp.mean(x, axis=(2, 3))                    # AdaptiveAvgPool2d(1) -> (N, C)
    s1 = pooled @ w1.T + b1                              # Conv2d(C, R, 1)
    s1 = s1 * jax.nn.sigmoid(s1)                         # Swish
    s2 = s1 @ w2.T + b2                                  # Conv2d(R, C, 1)
    gate = jax.nn.sigmoid(s2)                            # Sigmoid
    return x * gate[:, :, None, None]                    # x * se(x)


if __name__ == "__main__":
    key = jax.random.PRNGKey(0)
    kx, k1, k2, k3, k4 = jax.random.split(key, 5)

    # SqueezeExcitation(in_planes=4, reduced_dim=1), input NCHW (2, 4, 16, 16)
    N, C, H, W = 2, 4, 16, 16
    R = 1

    x = jax.random.normal(kx, (N, C, H, W), jnp.float32)
    w1 = 0.5 * jax.random.normal(k1, (R, C), jnp.float32)   # Conv2d(C->R) weight
    b1 = 0.1 * jax.random.normal(k2, (R,), jnp.float32)
    w2 = 0.5 * jax.random.normal(k3, (C, R), jnp.float32)   # Conv2d(R->C) weight
    b2 = 0.1 * jax.random.normal(k4, (C,), jnp.float32)

    wpack = pack_se_params(w1, b1, w2, b2)

    y = squeeze_excitation_pallas(x, wpack)
    y = jax.block_until_ready(y)

    y_ref = ref_se(x, w1, b1, w2, b2)
    assert y.shape == x.shape
    assert jnp.allclose(y, y_ref, atol=1e-5, rtol=1e-5), "mismatch vs reference"
    print("KERNEL_OK")
</pallas_src>

<mosaic_0001>
module attributes {stable_mosaic.version = 11 : i64} {
  func.func @se_kernel(%arg0: i32, %arg1: memref<1x4x256xf32, #tpu.memory_space<vmem>>, %arg2: memref<5x3xf32, #tpu.memory_space<vmem>>, %arg3: memref<1x4x256xf32, #tpu.memory_space<vmem>>) attributes {dimension_semantics = [#tpu.dimension_semantics<parallel>], iteration_bounds = array<i64: 2>, scalar_prefetch = 0 : i64, scratch_operands = 0 : i64, tpu.core_type = #tpu.core_type<tc>, window_params = [{transform_indices = @transform_0, window_bounds = array<i64: 1, 4, 256>}, {pipeline_mode = #tpu.pipeline_mode<synchronous>, transform_indices = @transform_1, window_bounds = array<i64: 5, 3>}, {transform_indices = @transform_2, window_bounds = array<i64: 1, 4, 256>}]} {
    %c0 = arith.constant 0 : index
    %c0_0 = arith.constant 0 : index
    %c0_1 = arith.constant 0 : index
    %0 = vector.load %arg1[%c0, %c0_0, %c0_1] : memref<1x4x256xf32, #tpu.memory_space<vmem>>, vector<1x4x256xf32>
    %1 = vector.shape_cast %0 : vector<1x4x256xf32> to vector<4x256xf32>
    %c0_2 = arith.constant 0 : index
    %c0_3 = arith.constant 0 : index
    %2 = vector.load %arg2[%c0_2, %c0_3] : memref<5x3xf32, #tpu.memory_space<vmem>>, vector<5x3xf32>
    %3 = vector.extract_strided_slice %2 {offsets = [0, 0], sizes = [4, 1], strides = [1, 1]} : vector<5x3xf32> to vector<4x1xf32>
    %4 = vector.extract_strided_slice %2 {offsets = [0, 1], sizes = [4, 1], strides = [1, 1]} : vector<5x3xf32> to vector<4x1xf32>
    %5 = vector.extract_strided_slice %2 {offsets = [0, 2], sizes = [4, 1], strides = [1, 1]} : vector<5x3xf32> to vector<4x1xf32>
    %6 = vector.extract_strided_slice %2 {offsets = [4, 0], sizes = [1, 1], strides = [1, 1]} : vector<5x3xf32> to vector<1x1xf32>
    %cst = arith.constant dense<0.000000e+00> : vector<4xf32>
    %7 = vector.multi_reduction <add>, %1, %cst [1] : vector<4x256xf32> to vector<4xf32>
    %8 = vector.shape_cast %7 : vector<4xf32> to vector<4x1xf32>
    %cst_4 = arith.constant 2.560000e+02 : f32
    %9 = vector.broadcast %cst_4 : f32 to vector<4x1xf32>
    %10 = arith.divf %8, %9 : vector<4x1xf32>
    %11 = arith.mulf %3, %10 : vector<4x1xf32>
    %cst_5 = arith.constant dense<0.000000e+00> : vector<1xf32>
    %12 = vector.multi_reduction <add>, %11, %cst_5 [0] : vector<4x1xf32> to vector<1xf32>
    %13 = vector.shape_cast %12 : vector<1xf32> to vector<1x1xf32>
    %14 = arith.addf %13, %6 : vector<1x1xf32>
    %15 = arith.negf %14 : vector<1x1xf32>
    %16 = math.exp %15 : vector<1x1xf32>
    %cst_6 = arith.constant 1.000000e+00 : f32
    %17 = vector.broadcast %cst_6 : f32 to vector<1x1xf32>
    %18 = arith.addf %17, %16 : vector<1x1xf32>
    %19 = arith.divf %17, %18 : vector<1x1xf32>
    %20 = arith.mulf %14, %19 : vector<1x1xf32>
    %21 = vector.broadcast %20 : vector<1x1xf32> to vector<4x1xf32>
    %22 = arith.mulf %4, %21 : vector<4x1xf32>
    %cst_7 = arith.constant dense<0.000000e+00> : vector<4xf32>
    %23 = vector.multi_reduction <add>, %22, %cst_7 [1] : vector<4x1xf32> to vector<4xf32>
    %24 = vector.shape_cast %23 : vector<4xf32> to vector<4x1xf32>
    %25 = arith.addf %24, %5 : vector<4x1xf32>
    %26 = arith.negf %25 : vector<4x1xf32>
    %27 = math.exp %26 : vector<4x1xf32>
    %cst_8 = arith.constant 1.000000e+00 : f32
    %28 = vector.broadcast %cst_8 : f32 to vector<4x1xf32>
    %29 = arith.addf %28, %27 : vector<4x1xf32>
    %30 = arith.divf %28, %29 : vector<4x1xf32>
    %31 = vector.broadcast %30 : vector<4x1xf32> to vector<4x256xf32>
    %32 = arith.mulf %1, %31 : vector<4x256xf32>
    %c0_9 = arith.constant 0 : index
    %c0_10 = arith.constant 0 : index
    %c0_11 = arith.constant 0 : index
    %33 = vector.load %arg3[%c0_9, %c0_10, %c0_11] : memref<1x4x256xf32, #tpu.memory_space<vmem>>, vector<1x4x256xf32>
    %34 = vector.shape_cast %33 : vector<1x4x256xf32> to vector<4x256xf32>
    %35 = vector.shape_cast %32 : vector<4x256xf32> to vector<1x4x256xf32>
    tpu.vector_store %arg3[%c0_9, %c0_10, %c0_11], %35 {strides = array<i32>} : memref<1x4x256xf32, #tpu.memory_space<vmem>>, vector<1x4x256xf32>,
    return
  }
  func.func @transform_0(%arg0: i32) -> (i32, i32, i32) {
    %c0_i32 = arith.constant 0 : i32
    %c0_i32_0 = arith.constant 0 : i32
    %c0_i32_1 = arith.constant 0 : i32
    return %arg0, %c0_i32, %c0_i32_0 : i32, i32, i32
  }
  func.func @transform_1(%arg0: i32) -> (i32, i32) {
    %c0_i32 = arith.constant 0 : i32
    %c0_i32_0 = arith.constant 0 : i32
    %c0_i32_1 = arith.constant 0 : i32
    return %c0_i32, %c0_i32_0 : i32, i32
  }
  func.func @transform_2(%arg0: i32) -> (i32, i32, i32) {
    %c0_i32 = arith.constant 0 : i32
    %c0_i32_0 = arith.constant 0 : i32
    %c0_i32_1 = arith.constant 0 : i32
    return %arg0, %c0_i32, %c0_i32_0 : i32, i32, i32
  }
}

</mosaic_0001>

<llo_original>
// kernel: tpu_custom_call.1
$region0: #{tpu_custom_call.1}
  #allocation0 [shape = 'u32[]', space=smem, size = 0x4, offset = 0x4, fixed_abs, tag = 'smem constant byte address 0x4 - core index']
  #allocation1 [shape = 'u32[144,128]{1,0:T(1,128)}', space=vmem, size = 0x12000, scoped, tag = 'internal scratch']
  %s0 = inlined_call_operand.hbm [shape: f32[2,4,256], index: 0, kind: input, shape index: {}]
  %s1 = inlined_call_operand.vmem [shape: f32[5,3], index: 1, kind: input, shape index: {}]
  %s2 = inlined_call_operand.hbm [shape: f32[2,4,256], index: 2, kind: output, shape index: {}]
  %s3 = sld [smem:[#allocation0]]
  $region45: #{tpu_custom_call.1} parent=0
    _
  %s5 = ssub.s32 1, %s3
  %s6 = scalar_select 0, %s5, %s3
  $region1: #{tpu_custom_call.1} parent=0
    #allocation2 [shape = 'u8[8192]{0}', space=vmem, size = 0x2000, scoped, tag = 'input window, operand 0']
    #allocation3 [shape = 's32[2]{0}', space=sflag, size = 0x8, scoped, tag = 'scoped memory for tpu_custom_call.1']
    #allocation4 [shape = 's32[2]{0}', space=sflag, size = 0x8, scoped, tag = 'scoped memory for tpu_custom_call.1']
    #allocation5 [shape = 'u8[8192]{0}', space=vmem, size = 0x2000, scoped, tag = 'output window, operand 0']
    %7 = vsyncpa [#allocation3], 0
    %s8 = scalar_lea.sflag [#allocation3], 1
    %9 = vsyncpa %s8, 0
    %10 = vsyncpa [#allocation4], 0
    %s11 = scalar_lea.sflag [#allocation4], 1
    %12 = vsyncpa %s11, 0
    loop: start=0, step=1, limit=4
    $region2: #{tpu_custom_call.1} parent=1 // loop_pre_header
      _
    $region3: #{tpu_custom_call.1} parent=1 // loop_header
      %s14 = sphi 0, %s18
      %p15 = scmp.ge.s32.totalorder %s14, 4
      %s24 = sphi 0, %s26
      %s27 = sphi 0, %s24
      %s28 = sphi 0, %s27
      %s44 = sphi 0, %s28
      %s48 = sphi 0, %s48
      %s50 = sphi 0, %s48
      %s51 = sphi 0, %s50
      %s65 = sphi 0, %s51
      %s71 = sphi 0, %s73
      %s74 = sphi 0, %s71
      %s75 = sphi 0, %s74
      %s91 = sphi 0, %s75
    $region4: #{tpu_custom_call.1} parent=1 // loop_header_branch
      %17 = sbr.rel (%p15) target = $region8
    $region5: #{tpu_custom_call.1} parent=1 // loop_body
      %s19 = ssub.s32 %s14, 1
      %s20 = ssub.s32 %s14, 2
      %s21 = sadd.s32 %s14, 1
      %s22 = ssub.s32 %s14, %s21
      %p23 = scmp.eq.s32.totalorder %s22, 0
      %s25 = sadd.s32 %s24, 1
      %s26 = scalar_select %p23, %s24, %s25
      %p29 = pneg %p23
      %p30 = scmp.eq.s32.totalorder %s14, 1
      %p31 = por %p29, %p30
      %p32 = scmp.ne.s32.totalorder %s24, %s27
      %p33 = scmp.eq.s32.totalorder %s14, 0
      %p34 = por %p32, %p33
      %p35 = scmp.ne.s32.totalorder %s24, %s27
      %p36 = scmp.eq.s32.totalorder %s19, 1
      %p37 = por %p35, %p36
      %p38 = scmp.ne.s32.totalorder %s27, %s28
      %p39 = scmp.eq.s32.totalorder %s19, 0
      %p40 = por %p38, %p39
      %p41 = scmp.ne.s32.totalorder %s27, %s28
      %p42 = scmp.eq.s32.totalorder %s20, 1
      %p43 = por %p41, %p42
      %p45 = scmp.ne.s32.totalorder %s28, %s44
      %p46 = scmp.eq.s32.totalorder %s20, 0
      %p47 = por %p45, %p46
      %s49 = sadd.s32 %s48, 1
      %p52 = scmp.eq.s32.totalorder %s14, 1
      %p53 = scmp.ne.s32.totalorder %s48, %s50
      %p54 = scmp.eq.s32.totalorder %s14, 0
      %p55 = por %p53, %p54
      %p56 = scmp.ne.s32.totalorder %s48, %s50
      %p57 = scmp.eq.s32.totalorder %s19, 1
      %p58 = por %p56, %p57
      %p59 = scmp.ne.s32.totalorder %s50, %s51
      %p60 = scmp.eq.s32.totalorder %s19, 0
      %p61 = por %p59, %p60
      %p62 = scmp.ne.s32.totalorder %s50, %s51
      %p63 = scmp.eq.s32.totalorder %s20, 1
      %p64 = por %p62, %p63
      %p66 = scmp.ne.s32.totalorder %s51, %s65
      %p67 = scmp.eq.s32.totalorder %s20, 0
      %p68 = por %p66, %p67
      %s69 = ssub.s32 %s14, %s21
      %p70 = scmp.eq.s32.totalorder %s69, 0
      %s72 = sadd.s32 %s71, 1
      %s73 = scalar_select %p70, %s71, %s72
      %p76 = pneg %p70
      %p77 = scmp.eq.s32.totalorder %s14, 1
      %p78 = por %p76, %p77
      %p79 = scmp.ne.s32.totalorder %s71, %s74
      %p80 = scmp.eq.s32.totalorder %s14, 0
      %p81 = por %p79, %p80
      %p82 = scmp.ne.s32.totalorder %s71, %s74
      %p83 = scmp.eq.s32.totalorder %s19, 1
      %p84 = por %p82, %p83
      %p85 = scmp.ne.s32.totalorder %s74, %s75
      %p86 = scmp.eq.s32.totalorder %s19, 0
      %p87 = por %p85, %p86
      %p88 = scmp.ne.s32.totalorder %s74, %s75
      %p89 = scmp.eq.s32.totalorder %s20, 1
      %p90 = por %p88, %p89
      %p92 = scmp.ne.s32.totalorder %s75, %s91
      %p93 = scmp.eq.s32.totalorder %s20, 0
      %p94 = por %p92, %p93
      %p95 = scmp.le.s32.totalorder 1, %s14
      %p96 = scmp.lt.s32.totalorder %s14, 3
      %p97 = pnand %p95, %p96
      %p98 = pneg %p97
      // Predicated region
      $region9: #{tpu_custom_call.1} parent=5 // pred_check
        _
      $region10: #{tpu_custom_call.1} parent=5 // pred_check_branch
        %100 = sbr.rel (%p97) target = $region12
      $region11: #{tpu_custom_call.1} parent=5 // pred_region
        %s101 = ssub.s32 %s14, 1
        // Predicated region
        $region13: #{tpu_custom_call.1} parent=11 // pred_check
          %p102 = pneg %p61
        $region14: #{tpu_custom_call.1} parent=11 // pred_check_branch
          %104 = sbr.rel (%p102) target = $region16
        $region15: #{tpu_custom_call.1} parent=11 // pred_region
          _
        $region16: #{tpu_custom_call.1} parent=11 // pred_fallthru
          _
      $region12: #{tpu_custom_call.1} parent=5 // pred_fallthru
        _
      %p105 = scmp.lt.s32.totalorder %s14, 2
      // Predicated region
      $region17: #{tpu_custom_call.1} parent=5 // pred_check
        %p106 = pneg %p105
      $region18: #{tpu_custom_call.1} parent=5 // pred_check_branch
        %108 = sbr.rel (%p106) target = $region20
      $region19: #{tpu_custom_call.1} parent=5 // pred_region
        // Predicated region
        $region21: #{tpu_custom_call.1} parent=19 // pred_check
          %p109 = pneg %p34
        $region22: #{tpu_custom_call.1} parent=19 // pred_check_branch
          %111 = sbr.rel (%p109) target = $region24
        $region23: #{tpu_custom_call.1} parent=19 // pred_region
          %s112 = sand.u32 %s24, 1
          %s113 = scalar_lea.sflag [#allocation3], %s112
          %s114 = sand.u32 %s24, 1
          %s115 = smul.addr %s114, 8
          %s116 = scalar_lea.vmem [#allocation2], %s115
          %s118 = ssub.s32 128, 128
          %119 = vsyncadd %s113, %s118
          %s120 = smul.addr %s14, 2
          %s121 = smul.addr %s120, 64
          %s122 = scalar_lea.hbm %s0, %s121
          %s124 = sshll.u32 %s116, 4
          %s125 = int_to_ptr.vmem [resolvable:$true] %s124
          %127 = dma.hbm_to_vmem [thread:$0]  %s122, 128, %s125, %s113
        $region24: #{tpu_custom_call.1} parent=19 // pred_fallthru
          _
      $region20: #{tpu_custom_call.1} parent=5 // pred_fallthru
        _
      %p128 = scmp.le.s32.totalorder 1, %s14
      %p129 = scmp.lt.s32.totalorder %s14, 3
      %p130 = pnand %p128, %p129
      %p131 = pneg %p130
      // Predicated region
      $region25: #{tpu_custom_call.1} parent=5 // pred_check
        _
      $region26: #{tpu_custom_call.1} parent=5 // pred_check_branch
        %133 = sbr.rel (%p130) target = $region28
      $region27: #{tpu_custom_call.1} parent=5 // pred_region
        %s134 = ssub.s32 %s14, 1
        %s135 = sand.u32 %s27, 1
        %s136 = scalar_lea.sflag [#allocation3], %s135
        %s137 = sand.u32 %s27, 1
        %s138 = smul.addr %s137, 8
        %s139 = scalar_lea.vmem [#allocation2], %s138
        // Predicated region
        $region29: #{tpu_custom_call.1} parent=27 // pred_check
          %p140 = pneg %p40
        $region30: #{tpu_custom_call.1} parent=27 // pred_check_branch
          %142 = sbr.rel (%p140) target = $region32
        $region31: #{tpu_custom_call.1} parent=27 // pred_region
          %143 = dma.done %s136, 128
        $region32: #{tpu_custom_call.1} parent=27 // pred_fallthru
          _
        %s144 = sand.u32 %s27, 1
        %s145 = scalar_lea.sflag [#allocation3], %s144
        %s146 = sand.u32 %s27, 1
        %s147 = smul.addr %s146, 8
        %s148 = scalar_lea.vmem [#allocation2], %s147
        %p149 = pneg %p40
        %p150 = pneg %p37
        %p151 = pneg %p61
        %p152 = pneg %p58
        %p153 = pneg %p87
        %p154 = pneg %p84
        %s155 = sand.u32 %s74, 1
        %s156 = scalar_lea.sflag [#allocation4], %s155
        %s157 = sand.u32 %s74, 1
        %s158 = smul.addr %s157, 8
        %s159 = scalar_lea.vmem [#allocation5], %s158
        %v160 = vld [vmem:[%s139] sm:$0xff]
        %v161 = vld [vmem:[%s1] sm:$0x1f]
        %v163 = vcombine.high %v160, %v160
        %vm165 = vcmask 1043456
        %v166 = vsel %vm165, %v160, 0.0
        %v167 = vsel %vm165, %v163, 0.0
        %v168 = vadd.f32 %v166, %v167
        %169 = vadd.xlane.f32.xlu0 %v168
        %v170 = vpop.xlane.xlu0 %169
        %v171 = vrcp.pop 256.0
        %v172 = vmul.f32 %v170, %v171
        %v173 = vmul.f32 %v161, %v172
        %vm174 = vcmask 3072
        %v175 = vsel %vm174, %v173, 0.0
        %v176 = vrot.slane %v175, 4
        %v177 = vadd.f32 %v175, %v176
        %v178 = vrot.slane %v177, 2
        %v179 = vadd.f32 %v177, %v178
        %v180 = vrot.slane %v179, 1
        %v181 = vadd.f32 %v179, %v180
        %v182 = vadd.f32 %v181, %v161
        %v183 = vxor.u32 %v182, 2147483648
        %v184 = vmul.f32 %v183, 1.442695
        %v185 = vpow.pop %v184
        %v186 = vadd.f32 %v185, 1.0
        %v187 = vrcp.pop %v186
        %v188 = vmul.f32 1.0, %v187
        %v189 = vmul.f32 %v182, %v188
        %v190 = vlaneseq
        %v191 = vshrl.u32 %v190, 7
        %v192 = vsub.s32 4, %v191
        %v193 = vrot.slane %v189, %v192
        %195 = vrot.lane.b32.xlu0 %v193, 1
        %v196 = vpop.permute.xlu0 %195
        %v198 = vmul.f32 %v161, %v196
        %v199 = vadd.f32 %v198, 0.0
        %201 = vrot.lane.b32.xlu0 %v161, 127
        %v202 = vpop.permute.xlu0 %201
        %v204 = vadd.f32 %v199, %v202
        %v205 = vxor.u32 %v204, 2147483648
        %v206 = vmul.f32 %v205, 1.442695
        %v207 = vpow.pop %v206
        %v208 = vadd.f32 %v207, 1.0
        %v209 = vrcp.pop %v208
        %v210 = vmul.f32 1.0, %v209
        %212 = vset.pattern.permute.xlu0 1
        %213 = vperm.xlu0 %212, %v210
        %v214 = vpop.permute.xlu0 %213
        %v216 = vunpack.c.l.s4 839922192
        %v217 = vunpack.c.0.s8 %v216
        %v218 = vlaneseq
        %v219 = vshrl.u32 %v218, 7
        %v220 = vsub.s32 %v217, %v219
        %v221 = vrot.slane %v214, %v220
        %v223 = vmul.f32 %v160, %v221
        %224 = vst [vmem:[%s159] sm:$0xff] %v223
        %s225 = sand.u32 %s74, 1
        %s226 = scalar_lea.sflag [#allocation4], %s225
        %s227 = sand.u32 %s74, 1
        %s228 = smul.addr %s227, 8
        %s229 = scalar_lea.vmem [#allocation5], %s228
        // Predicated region
        $region33: #{tpu_custom_call.1} parent=27 // pred_check
          %p230 = pneg %p84
        $region34: #{tpu_custom_call.1} parent=27 // pred_check_branch
          %232 = sbr.rel (%p230) target = $region36
        $region35: #{tpu_custom_call.1} parent=27 // pred_region
          %s234 = ssub.s32 128, 128
          %235 = vsyncadd %s226, %s234
          %s236 = smul.addr %s19, 2
          %s237 = smul.addr %s236, 64
          %s238 = scalar_lea.hbm %s2, %s237
          %s240 = sshll.u32 %s229, 4
          %s241 = int_to_ptr.vmem [resolvable:$true] %s240
          %243 = dma.vmem_to_hbm [thread:$0]  %s241, 128, %s238, %s226
        $region36: #{tpu_custom_call.1} parent=27 // pred_fallthru
          _
      $region28: #{tpu_custom_call.1} parent=5 // pred_fallthru
        _
      %p244 = scmp.le.s32.totalorder 2, %s14
      // Predicated region
      $region37: #{tpu_custom_call.1} parent=5 // pred_check
        %p245 = pneg %p244
      $region38: #{tpu_custom_call.1} parent=5 // pred_check_branch
        %247 = sbr.rel (%p245) target = $region40
      $region39: #{tpu_custom_call.1} parent=5 // pred_region
        %s248 = ssub.s32 %s14, 2
        // Predicated region
        $region41: #{tpu_custom_call.1} parent=39 // pred_check
          %p249 = pneg %p90
        $region42: #{tpu_custom_call.1} parent=39 // pred_check_branch
          %251 = sbr.rel (%p249) target = $region44
        $region43: #{tpu_custom_call.1} parent=39 // pred_region
          %s252 = sand.u32 %s75, 1
          %s253 = scalar_lea.sflag [#allocation4], %s252
          %s254 = sand.u32 %s75, 1
          %s255 = smul.addr %s254, 8
          %s256 = scalar_lea.vmem [#allocation5], %s255
          %257 = dma.done %s253, 128
        $region44: #{tpu_custom_call.1} parent=39 // pred_fallthru
          _
      $region40: #{tpu_custom_call.1} parent=5 // pred_fallthru
        _
    $region6: #{tpu_custom_call.1} parent=1 // loop_footer
      %s18 = sadd.s32 1, %s14
    $region7: #{tpu_custom_call.1} parent=1 // loop_footer_branch
      %13 = sbr.rel target = $region3
    $region8: #{tpu_custom_call.1} parent=1 // loop_exit
      _
    %258 = vsyncpa [#allocation3], 1
    %s259 = scalar_lea.sflag [#allocation3], 1
    %260 = vsyncpa %s259, 1
    %261 = vsyncpa [#allocation4], 1
    %s262 = scalar_lea.sflag [#allocation4], 1
    %263 = vsyncpa %s262, 1

</llo_original>
